<compile_context>
chip_gen: v5e
topology: v5e:2x2
jax: 0.10.0
libtpu: 0.0.40
codegen_flags: <defaults>
</compile_context>

<pallas_src>
import functools

import jax
import jax.numpy as jnp
from jax import lax
from jax.experimental import pallas as pl
from jax.experimental.pallas import tpu as pltpu

# Plain Python float (inlined literal inside the kernel; NOT a captured jnp
# constant).  1e30 dominates any realistic squared distance while staying far
# from f32 overflow when combined with ||x||^2.
_BIG = 1e30


def _triplet_tile_kernel(xr_ref, xc_ref, sqc_ref, sqr_ref, tc_ref, tr_ref,
                         hinge_ref, ap_ref, an_ref, *, margin):
    """One (row_tile, col_tile) step of streaming hard mining on dist^2."""
    j = pl.program_id(1)

    # Gram tile on the MXU: contract feature dims directly (no transposes).
    gram = lax.dot_general(
        xr_ref[...], xc_ref[...],
        dimension_numbers=(((1,), (1,)), ((), ())),
        preferred_element_type=jnp.float32)                      # (tm, tn)

    # Partial squared distance: ||x_j||^2 - 2 x_i.x_j.  The per-row ||x_i||^2
    # is a constant shift along the reduction axis and is added in finalize.
    part = sqr_ref[...] - 2.0 * gram                              # (tm, tn)

    same = tc_ref[...] == tr_ref[...]                             # (tm, tn) bool
    ap_cand = jnp.where(same, part, -_BIG)     # non-positives -> -BIG
    an_cand = jnp.where(same, _BIG, part)      # positives     -> +BIG

    # Wide running accumulators (elementwise only; lane reduce deferred).
    @pl.when(j == 0)
    def _():
        ap_ref[...] = ap_cand
        an_ref[...] = an_cand

    @pl.when(j > 0)
    def _():
        ap_ref[...] = jnp.maximum(ap_ref[...], ap_cand)
        an_ref[...] = jnp.minimum(an_ref[...], an_cand)

    # Finalize this row tile after the last column tile: one lane reduction,
    # then clamp + sqrt on just (tm, 1) values, then the hinge.
    @pl.when(j == pl.num_programs(1) - 1)
    def _():
        sq_i = sqc_ref[...]                                       # (tm, 1)
        ap2 = jnp.max(ap_ref[...], axis=1, keepdims=True) + sq_i
        an2 = jnp.min(an_ref[...], axis=1, keepdims=True) + sq_i
        d_ap = jnp.sqrt(jnp.maximum(ap2, 1e-12))
        d_an = jnp.sqrt(jnp.maximum(an2, 1e-12))
        hinge_ref[...] = jnp.maximum(d_ap - d_an + margin, 0.0)


def _round_up(v, m):
    return -(-v // m) * m


def _choose_tiles(n):
    """Returns (padded_n, row_tile, col_tile)."""
    if n < 256:
        # Single small block; only pad the batch to the 8-sublane multiple.
        n_pad = max(_round_up(n, 8), 8)
        return n_pad, n_pad, n_pad
    n_pad = _round_up(n, 128)
    # Row tile <= 256 and at least 2 row tiles so the "parallel" grid axis can
    # shard across v7x's two TensorCores.
    tile_m = 256 if (n_pad % 256 == 0 and n_pad >= 512) else 128
    # Streaming column tile: as wide as divides cleanly (<= 512) to amortize
    # per-step pipeline overhead; working set stays well inside the default
    # scoped-VMEM limit on v5e/v6e/v7x at these sizes.
    tile_n = 128
    for t in (512, 256):
        if n_pad % t == 0:
            tile_n = t
            break
    return n_pad, tile_m, tile_n


def normal_triplet_loss(inputs, targets, margin=0.3):
    """inputs: (n, feat_dim) float; targets: (n,) int labels -> scalar loss."""
    n, d = inputs.shape
    x = inputs
    if not jnp.issubdtype(x.dtype, jnp.floating):
        x = x.astype(jnp.float32)
    xf = x.astype(jnp.float32)

    n_pad, tile_m, tile_n = _choose_tiles(n)
    pad = n_pad - n

    sq = jnp.sum(xf * xf, axis=1)                  # (n,) f32 squared norms
    t = targets.astype(jnp.int32)

    if pad:
        x = jnp.pad(x, ((0, pad), (0, 0)))
        sq_col = jnp.pad(sq, (0, pad)).reshape(n_pad, 1)
        # Padded columns: huge squared norm in the row vector (never selected
        # as hard negative; their zero embeddings give gram = 0) and a label
        # no real row carries (never selected as hard positive).
        sq_row = jnp.pad(sq, (0, pad), constant_values=_BIG).reshape(1, n_pad)
        pad_label = jnp.max(t) + 1
        t_full = jnp.concatenate(
            [t, jnp.broadcast_to(pad_label, (pad,)).astype(jnp.int32)])
    else:
        sq_col = sq.reshape(n_pad, 1)
        sq_row = sq.reshape(1, n_pad)
        t_full = t
    t_col = t_full.reshape(n_pad, 1)
    t_row = t_full.reshape(1, n_pad)

    grid = (n_pad // tile_m, n_pad // tile_n)

    hinge = pl.pallas_call(
        functools.partial(_triplet_tile_kernel, margin=float(margin)),
        out_shape=jax.ShapeDtypeStruct((n_pad, 1), jnp.float32),
        grid_spec=pltpu.PrefetchScalarGridSpec(
            num_scalar_prefetch=0,
            grid=grid,
            in_specs=[
                pl.BlockSpec((tile_m, d), lambda i, j: (i, 0)),   # x row tile
                pl.BlockSpec((tile_n, d), lambda i, j: (j, 0)),   # x col tile
                pl.BlockSpec((tile_m, 1), lambda i, j: (i, 0)),   # ||x||^2 col
                pl.BlockSpec((1, tile_n), lambda i, j: (0, j)),   # ||x||^2 row
                pl.BlockSpec((tile_m, 1), lambda i, j: (i, 0)),   # labels col
                pl.BlockSpec((1, tile_n), lambda i, j: (0, j)),   # labels row
            ],
            out_specs=pl.BlockSpec((tile_m, 1), lambda i, j: (i, 0)),
            scratch_shapes=[
                pltpu.VMEM((tile_m, tile_n), jnp.float32),   # wide running max
                pltpu.VMEM((tile_m, tile_n), jnp.float32),   # wide running min
            ],
        ),
        compiler_params=pltpu.CompilerParams(
            dimension_semantics=("parallel", "arbitrary")),
    )(x, x, sq_col, sq_row, t_col, t_row)

    # MarginRankingLoss with y=1: mean(max(0, dist_ap - dist_an + margin)),
    # over real (un-padded) rows only.
    return jnp.mean(hinge[:n, 0])


def _reference(inputs, targets, margin=0.3):
    """Pure-JAX reference mirroring the PyTorch forward."""
    x = inputs.astype(jnp.float32)
    sq = jnp.sum(x * x, axis=1, keepdims=True)
    gram = jnp.dot(x, x.T, precision=lax.Precision.HIGHEST)
    dist2 = sq + sq.T - 2.0 * gram
    dist = jnp.sqrt(jnp.maximum(dist2, 1e-12))
    mask = targets[:, None] == targets[None, :]
    dist_ap = jnp.max(jnp.where(mask, dist, -jnp.inf), axis=1)
    dist_an = jnp.min(jnp.where(mask, jnp.inf, dist), axis=1)
    return jnp.mean(jnp.maximum(dist_ap - dist_an + margin, 0.0))


if __name__ == "__main__":
    key = jax.random.PRNGKey(0)
    k1, k2, k3 = jax.random.split(key, 3)

    # Small case consistent with the module: batch=8, feat_dim=32, 4 ids x 2.
    n, feat_dim = 8, 32
    inputs = jax.random.normal(k1, (n, feat_dim), dtype=jnp.float32)
    targets = jnp.array([0, 0, 1, 1, 2, 2, 3, 3], dtype=jnp.int32)
    loss = jax.block_until_ready(normal_triplet_loss(inputs, targets, margin=0.3))
    ref = _reference(inputs, targets, margin=0.3)
    assert jnp.allclose(loss, ref, atol=1e-5, rtol=1e-5), (loss, ref)

    # Non-multiple batch: exercises padding plus a (3, 3) streaming grid.
    n2, d2 = 300, 48
    inputs2 = jax.random.normal(k2, (n2, d2), dtype=jnp.float32)
    targets2 = jnp.arange(n2, dtype=jnp.int32) % 10
    loss2 = jax.block_until_ready(normal_triplet_loss(inputs2, targets2, margin=0.3))
    ref2 = _reference(inputs2, targets2, margin=0.3)
    assert jnp.allclose(loss2, ref2, atol=1e-4, rtol=1e-4), (loss2, ref2)

    # Larger case: 4 row tiles of 256 (megacore-shardable) x 2 col tiles of 512.
    n3, d3 = 1024, 64
    inputs3 = jax.random.normal(k3, (n3, d3), dtype=jnp.float32)
    targets3 = jnp.arange(n3, dtype=jnp.int32) % 16
    loss3 = jax.block_until_ready(normal_triplet_loss(inputs3, targets3, margin=0.3))
    ref3 = _reference(inputs3, targets3, margin=0.3)
    assert jnp.allclose(loss3, ref3, atol=1e-4, rtol=1e-4), (loss3, ref3)

    print("KERNEL_OK")
</pallas_src>

<mosaic_0001>
module attributes {stable_mosaic.version = 11 : i64} {
  func.func @_triplet_tile_kernel(%arg0: i32, %arg1: i32, %arg2: memref<8x32xf32, #tpu.memory_space<vmem>>, %arg3: memref<8x32xf32, #tpu.memory_space<vmem>>, %arg4: memref<8x1xf32, #tpu.memory_space<vmem>>, %arg5: memref<1x8xf32, #tpu.memory_space<vmem>>, %arg6: memref<8x1xi32, #tpu.memory_space<vmem>>, %arg7: memref<1x8xi32, #tpu.memory_space<vmem>>, %arg8: memref<8x1xf32, #tpu.memory_space<vmem>>, %arg9: memref<8x8xf32, #tpu.memory_space<vmem>>, %arg10: memref<8x8xf32, #tpu.memory_space<vmem>>) attributes {dimension_semantics = [#tpu.dimension_semantics<parallel>, #tpu.dimension_semantics<arbitrary>], iteration_bounds = array<i64: 1, 1>, scalar_prefetch = 0 : i64, scratch_operands = 2 : i64, tpu.core_type = #tpu.core_type<tc>, window_params = [{transform_indices = @transform_0, window_bounds = array<i64: 8, 32>}, {transform_indices = @transform_1, window_bounds = array<i64: 8, 32>}, {transform_indices = @transform_2, window_bounds = array<i64: 8, 1>}, {transform_indices = @transform_3, window_bounds = array<i64: 1, 8>}, {transform_indices = @transform_4, window_bounds = array<i64: 8, 1>}, {transform_indices = @transform_5, window_bounds = array<i64: 1, 8>}, {transform_indices = @transform_6, window_bounds = array<i64: 8, 1>}]} {
    %c0 = arith.constant 0 : index
    %c0_0 = arith.constant 0 : index
    %0 = vector.load %arg2[%c0, %c0_0] : memref<8x32xf32, #tpu.memory_space<vmem>>, vector<8x32xf32>
    %c0_1 = arith.constant 0 : index
    %c0_2 = arith.constant 0 : index
    %1 = vector.load %arg3[%c0_1, %c0_2] : memref<8x32xf32, #tpu.memory_space<vmem>>, vector<8x32xf32>
    %cst = arith.constant dense<0.000000e+00> : vector<8x8xf32>
    %2 = tpu.matmul %0, %1, %cst {dimension_numbers = #tpu.dot_dimension_numbers<[1], [1], [0], [0], [0, 0, 1, 0], [], []>} : vector<8x32xf32>, vector<8x32xf32>, vector<8x8xf32> -> vector<8x8xf32>
    %c0_3 = arith.constant 0 : index
    %c0_4 = arith.constant 0 : index
    %3 = vector.load %arg5[%c0_3, %c0_4] : memref<1x8xf32, #tpu.memory_space<vmem>>, vector<1x8xf32>
    %cst_5 = arith.constant 2.000000e+00 : f32
    %4 = vector.broadcast %cst_5 : f32 to vector<8x8xf32>
    %5 = arith.mulf %4, %2 : vector<8x8xf32>
    %6 = vector.broadcast %3 : vector<1x8xf32> to vector<8x8xf32>
    %7 = arith.subf %6, %5 : vector<8x8xf32>
    %c0_6 = arith.constant 0 : index
    %c0_7 = arith.constant 0 : index
    %8 = vector.load %arg6[%c0_6, %c0_7] : memref<8x1xi32, #tpu.memory_space<vmem>>, vector<8x1xi32>
    %c0_8 = arith.constant 0 : index
    %c0_9 = arith.constant 0 : index
    %9 = vector.load %arg7[%c0_8, %c0_9] : memref<1x8xi32, #tpu.memory_space<vmem>>, vector<1x8xi32>
    %10 = vector.broadcast %8 : vector<8x1xi32> to vector<8x8xi32>
    %11 = vector.broadcast %9 : vector<1x8xi32> to vector<8x8xi32>
    %12 = arith.cmpi eq, %10, %11 : vector<8x8xi32>
    %cst_10 = arith.constant -1.000000e+30 : f32
    %13 = vector.broadcast %cst_10 : f32 to vector<8x8xf32>
    %14 = arith.select %12, %7, %13 : vector<8x8xi1>, vector<8x8xf32>
    %cst_11 = arith.constant 1.000000e+30 : f32
    %15 = vector.broadcast %cst_11 : f32 to vector<8x8xf32>
    %16 = arith.select %12, %15, %7 : vector<8x8xi1>, vector<8x8xf32>
    %c0_i32 = arith.constant 0 : i32
    %17 = arith.cmpi eq, %arg1, %c0_i32 : i32
    %18 = arith.extui %17 : i1 to i32
    %c0_i32_12 = arith.constant 0 : i32
    %19 = arith.cmpi ne, %18, %c0_i32_12 : i32
    scf.if %19 {
      %c0_17 = arith.constant 0 : index
      %c0_18 = arith.constant 0 : index
      %26 = vector.load %arg9[%c0_17, %c0_18] : memref<8x8xf32, #tpu.memory_space<vmem>>, vector<8x8xf32>
      tpu.vector_store %arg9[%c0_17, %c0_18], %14 {strides = array<i32>} : memref<8x8xf32, #tpu.memory_space<vmem>>, vector<8x8xf32>,
      %c0_19 = arith.constant 0 : index
      %c0_20 = arith.constant 0 : index
      %27 = vector.load %arg10[%c0_19, %c0_20] : memref<8x8xf32, #tpu.memory_space<vmem>>, vector<8x8xf32>
      tpu.vector_store %arg10[%c0_19, %c0_20], %16 {strides = array<i32>} : memref<8x8xf32, #tpu.memory_space<vmem>>, vector<8x8xf32>,
    } else {
    }
    %c0_i32_13 = arith.constant 0 : i32
    %20 = arith.cmpi sgt, %arg1, %c0_i32_13 : i32
    %21 = arith.extui %20 : i1 to i32
    %c0_i32_14 = arith.constant 0 : i32
    %22 = arith.cmpi ne, %21, %c0_i32_14 : i32
    scf.if %22 {
      %c0_17 = arith.constant 0 : index
      %c0_18 = arith.constant 0 : index
      %26 = vector.load %arg9[%c0_17, %c0_18] : memref<8x8xf32, #tpu.memory_space<vmem>>, vector<8x8xf32>
      %27 = arith.maximumf %26, %14 : vector<8x8xf32>
      %c0_19 = arith.constant 0 : index
      %c0_20 = arith.constant 0 : index
      %28 = vector.load %arg9[%c0_19, %c0_20] : memref<8x8xf32, #tpu.memory_space<vmem>>, vector<8x8xf32>
      tpu.vector_store %arg9[%c0_19, %c0_20], %27 {strides = array<i32>} : memref<8x8xf32, #tpu.memory_space<vmem>>, vector<8x8xf32>,
      %c0_21 = arith.constant 0 : index
      %c0_22 = arith.constant 0 : index
      %29 = vector.load %arg10[%c0_21, %c0_22] : memref<8x8xf32, #tpu.memory_space<vmem>>, vector<8x8xf32>
      %30 = arith.minimumf %29, %16 : vector<8x8xf32>
      %c0_23 = arith.constant 0 : index
      %c0_24 = arith.constant 0 : index
      %31 = vector.load %arg10[%c0_23, %c0_24] : memref<8x8xf32, #tpu.memory_space<vmem>>, vector<8x8xf32>
      tpu.vector_store %arg10[%c0_23, %c0_24], %30 {strides = array<i32>} : memref<8x8xf32, #tpu.memory_space<vmem>>, vector<8x8xf32>,
    } else {
    }
    %c0_i32_15 = arith.constant 0 : i32
    %23 = arith.cmpi eq, %arg1, %c0_i32_15 : i32
    %24 = arith.extui %23 : i1 to i32
    %c0_i32_16 = arith.constant 0 : i32
    %25 = arith.cmpi ne, %24, %c0_i32_16 : i32
    scf.if %25 {
      %c0_17 = arith.constant 0 : index
      %c0_18 = arith.constant 0 : index
      %26 = vector.load %arg4[%c0_17, %c0_18] : memref<8x1xf32, #tpu.memory_space<vmem>>, vector<8x1xf32>
      %c0_19 = arith.constant 0 : index
      %c0_20 = arith.constant 0 : index
      %27 = vector.load %arg9[%c0_19, %c0_20] : memref<8x8xf32, #tpu.memory_space<vmem>>, vector<8x8xf32>
      %cst_21 = arith.constant dense<0xFF800000> : vector<8xf32>
      %28 = vector.multi_reduction <maximumf>, %27, %cst_21 [1] : vector<8x8xf32> to vector<8xf32>
      %29 = vector.shape_cast %28 : vector<8xf32> to vector<8x1xf32>
      %30 = arith.addf %29, %26 : vector<8x1xf32>
      %c0_22 = arith.constant 0 : index
      %c0_23 = arith.constant 0 : index
      %31 = vector.load %arg10[%c0_22, %c0_23] : memref<8x8xf32, #tpu.memory_space<vmem>>, vector<8x8xf32>
      %cst_24 = arith.constant dense<0x7F800000> : vector<8xf32>
      %32 = vector.multi_reduction <minimumf>, %31, %cst_24 [1] : vector<8x8xf32> to vector<8xf32>
      %33 = vector.shape_cast %32 : vector<8xf32> to vector<8x1xf32>
      %34 = arith.addf %33, %26 : vector<8x1xf32>
      %cst_25 = arith.constant 9.99999996E-13 : f32
      %35 = vector.broadcast %cst_25 : f32 to vector<8x1xf32>
      %36 = arith.maximumf %30, %35 : vector<8x1xf32>
      %37 = math.sqrt %36 : vector<8x1xf32>
      %cst_26 = arith.constant 9.99999996E-13 : f32
      %38 = vector.broadcast %cst_26 : f32 to vector<8x1xf32>
      %39 = arith.maximumf %34, %38 : vector<8x1xf32>
      %40 = math.sqrt %39 : vector<8x1xf32>
      %41 = arith.subf %37, %40 : vector<8x1xf32>
      %cst_27 = arith.constant 3.000000e-01 : f32
      %42 = vector.broadcast %cst_27 : f32 to vector<8x1xf32>
      %43 = arith.addf %41, %42 : vector<8x1xf32>
      %cst_28 = arith.constant 0.000000e+00 : f32
      %44 = vector.broadcast %cst_28 : f32 to vector<8x1xf32>
      %45 = arith.maximumf %43, %44 : vector<8x1xf32>
      %c0_29 = arith.constant 0 : index
      %c0_30 = arith.constant 0 : index
      %46 = vector.load %arg8[%c0_29, %c0_30] : memref<8x1xf32, #tpu.memory_space<vmem>>, vector<8x1xf32>
      tpu.vector_store %arg8[%c0_29, %c0_30], %45 {strides = array<i32>} : memref<8x1xf32, #tpu.memory_space<vmem>>, vector<8x1xf32>,
    } else {
    }
    return
  }
  func.func @transform_0(%arg0: i32, %arg1: i32) -> (i32, i32) {
    %c0_i32 = arith.constant 0 : i32
    %c0_i32_0 = arith.constant 0 : i32
    return %arg0, %c0_i32 : i32, i32
  }
  func.func @transform_1(%arg0: i32, %arg1: i32) -> (i32, i32) {
    %c0_i32 = arith.constant 0 : i32
    %c0_i32_0 = arith.constant 0 : i32
    return %arg1, %c0_i32 : i32, i32
  }
  func.func @transform_2(%arg0: i32, %arg1: i32) -> (i32, i32) {
    %c0_i32 = arith.constant 0 : i32
    %c0_i32_0 = arith.constant 0 : i32
    return %arg0, %c0_i32 : i32, i32
  }
  func.func @transform_3(%arg0: i32, %arg1: i32) -> (i32, i32) {
    %c0_i32 = arith.constant 0 : i32
    %c0_i32_0 = arith.constant 0 : i32
    return %c0_i32, %arg1 : i32, i32
  }
  func.func @transform_4(%arg0: i32, %arg1: i32) -> (i32, i32) {
    %c0_i32 = arith.constant 0 : i32
    %c0_i32_0 = arith.constant 0 : i32
    return %arg0, %c0_i32 : i32, i32
  }
  func.func @transform_5(%arg0: i32, %arg1: i32) -> (i32, i32) {
    %c0_i32 = arith.constant 0 : i32
    %c0_i32_0 = arith.constant 0 : i32
    return %c0_i32, %arg1 : i32, i32
  }
  func.func @transform_6(%arg0: i32, %arg1: i32) -> (i32, i32) {
    %c0_i32 = arith.constant 0 : i32
    %c0_i32_0 = arith.constant 0 : i32
    return %arg0, %c0_i32 : i32, i32
  }
}

</mosaic_0001>

<llo_original>
// kernel: tpu_custom_call.1
$region0: #{tpu_custom_call.1}
  #allocation0 [shape = 'u32[]', space=smem, size = 0x4, offset = 0x4, fixed_abs, tag = 'smem constant byte address 0x4 - core index']
  #allocation1 [shape = 'u32[72,128]{1,0:T(1,128)}', space=vmem, size = 0x9000, scoped, tag = 'internal scratch']
  #allocation2 [shape = 'f32[8,8]{1,0:T(8,128)}', space=vmem, size = 0x1000, scoped, tag = 'scratch operand']
  #allocation3 [shape = 'f32[8,8]{1,0:T(8,128)}', space=vmem, size = 0x1000, scoped, tag = 'scratch operand']
  %s0 = inlined_call_operand.vmem [shape: f32[8,32], index: 0, kind: input, shape index: {}]
  %s1 = inlined_call_operand.vmem [shape: f32[8,32], index: 1, kind: input, shape index: {}]
  %s2 = inlined_call_operand.vmem [shape: f32[8,1], index: 2, kind: input, shape index: {}]
  %s3 = inlined_call_operand.vmem [shape: f32[1,8], index: 3, kind: input, shape index: {}]
  %s4 = inlined_call_operand.vmem [shape: s32[8,1], index: 4, kind: input, shape index: {}]
  %s5 = inlined_call_operand.vmem [shape: s32[1,8], index: 5, kind: input, shape index: {}]
  %s6 = inlined_call_operand.vmem [shape: f32[8,1], index: 6, kind: output, shape index: {}]
  %s7 = sld [smem:[#allocation0]]
  $region46: #{tpu_custom_call.1} parent=0
    _
  %s9 = ssub.s32 1, %s7
  %s10 = scalar_select 0, %s9, %s7
  // Predicated region
  $region2: #{tpu_custom_call.1} parent=0 // pred_check
    _
  $region3: #{tpu_custom_call.1} parent=0 // pred_check_branch
    %12 = sbr.rel (0) target = $region5
  $region4: #{tpu_custom_call.1} parent=0 // pred_region
    _
  $region5: #{tpu_custom_call.1} parent=0 // pred_fallthru
    _
  // Predicated region
  $region6: #{tpu_custom_call.1} parent=0 // pred_check
    _
  $region7: #{tpu_custom_call.1} parent=0 // pred_check_branch
    %14 = sbr.rel (0) target = $region9
  $region8: #{tpu_custom_call.1} parent=0 // pred_region
    _
  $region9: #{tpu_custom_call.1} parent=0 // pred_fallthru
    _
  // Predicated region
  $region10: #{tpu_custom_call.1} parent=0 // pred_check
    _
  $region11: #{tpu_custom_call.1} parent=0 // pred_check_branch
    %16 = sbr.rel (0) target = $region13
  $region12: #{tpu_custom_call.1} parent=0 // pred_region
    _
  $region13: #{tpu_custom_call.1} parent=0 // pred_fallthru
    _
  // Predicated region
  $region14: #{tpu_custom_call.1} parent=0 // pred_check
    _
  $region15: #{tpu_custom_call.1} parent=0 // pred_check_branch
    %18 = sbr.rel (0) target = $region17
  $region16: #{tpu_custom_call.1} parent=0 // pred_region
    _
  $region17: #{tpu_custom_call.1} parent=0 // pred_fallthru
    _
  // Predicated region
  $region18: #{tpu_custom_call.1} parent=0 // pred_check
    _
  $region19: #{tpu_custom_call.1} parent=0 // pred_check_branch
    %20 = sbr.rel (0) target = $region21
  $region20: #{tpu_custom_call.1} parent=0 // pred_region
    _
  $region21: #{tpu_custom_call.1} parent=0 // pred_fallthru
    _
  // Predicated region
  $region22: #{tpu_custom_call.1} parent=0 // pred_check
    _
  $region23: #{tpu_custom_call.1} parent=0 // pred_check_branch
    %22 = sbr.rel (0) target = $region25
  $region24: #{tpu_custom_call.1} parent=0 // pred_region
    _
  $region25: #{tpu_custom_call.1} parent=0 // pred_fallthru
    _
  %v23 = vld [vmem:[%s0] sm:$0xff]
  %v24 = vld [vmem:[%s1] sm:$0xff]
  %vm25 = vcmask 261120
  %v27 = vsel %vm25, %v23, 0
  %v30 = vsel %vm25, %v24, 0
  %32 = vmatpush.xpose.msra.mxu0 0.0
  %33 = vmatpush.xpose.msra.mxu0 0.0
  %34 = vmatpush.xpose.msra.mxu0 0.0
  %35 = vmatpush.xpose.msra.mxu0 0.0
  %36 = vmatpush.xpose.msra.mxu0 0.0
  %37 = vmatpush.xpose.msra.mxu0 0.0
  %38 = vmatpush.xpose.msra.mxu0 0.0
  %39 = vmatpush.xpose.msra.mxu0 0.0
  %40 = vmatpush.xpose.msra.mxu0 0.0
  %41 = vmatpush.xpose.msra.mxu0 0.0
  %42 = vmatpush.xpose.msra.mxu0 0.0
  %43 = vmatpush.xpose.msra.mxu0 0.0
  %44 = vmatpush.xpose.msra.mxu0 0.0
  %45 = vmatpush.xpose.msra.mxu0 0.0
  %46 = vmatpush.xpose.msra.mxu0 0.0
  %47 = vmatpush.xpose.msra.mxu0 %v30
  %48 = vmatmul.f32.gmra.mxu0 %v27
  %v49 = vpop.f32.mrf.mxu0
  %v50 = vadd.f32 0.0, %v49
  %51 = vdwg.mxu0
  %v52 = vld [vmem:[%s3] sm:$0x1]
  %v53 = vmul.f32 %v50, 2.0
  %v55 = vperm.slane %v52, 0
  %v57 = vsub.f32 %v55, %v53
  %v58 = vld [vmem:[%s4] sm:$0xff]
  %v59 = vld [vmem:[%s5] sm:$0x1]
  %60 = vset.pattern.permute.xlu0 0
  %61 = vperm.xlu0 %60, %v58
  %v62 = vpop.permute.xlu0 %61
  %v63 = vperm.slane %v59, 0
  %vm64 = vcmp.eq.s32.totalorder %v62, %v63
  %v65 = vsel %vm64, %v57, -1e+30
  %v66 = vsel %vm64, 1e+30, %v57
  %p67 = scmp.eq.s32.totalorder 0, 0
  // Predicated region
  $region26: #{tpu_custom_call.1} parent=0 // pred_check
    %p68 = pneg %p67
  $region27: #{tpu_custom_call.1} parent=0 // pred_check_branch
    %70 = sbr.rel (%p68) target = $region29
  $region28: #{tpu_custom_call.1} parent=0 // pred_region
    %vm71 = vcmask 64512
    %72 = vst.msk [vmem:[#allocation2] sm:$0xff] %vm71, %v65
    %73 = vst.msk [vmem:[#allocation3] sm:$0xff] %vm71, %v66
  $region29: #{tpu_custom_call.1} parent=0 // pred_fallthru
    _
  %p74 = scmp.gt.s32.totalorder 0, 0
  // Predicated region
  $region30: #{tpu_custom_call.1} parent=0 // pred_check
    %p75 = pneg %p74
  $region31: #{tpu_custom_call.1} parent=0 // pred_check_branch
    %77 = sbr.rel (%p75) target = $region33
  $region32: #{tpu_custom_call.1} parent=0 // pred_region
    %v78 = vld [vmem:[#allocation2] sm:$0xff]
    %v79 = vmax.f32 %v78, %v65
    %vm80 = vcmask 64512
    %81 = vst.msk [vmem:[#allocation2] sm:$0xff] %vm80, %v79
    %v82 = vld [vmem:[#allocation3] sm:$0xff]
    %v83 = vmin.f32 %v82, %v66
    %84 = vst.msk [vmem:[#allocation3] sm:$0xff] %vm80, %v83
  $region33: #{tpu_custom_call.1} parent=0 // pred_fallthru
    _
  // Predicated region
  $region34: #{tpu_custom_call.1} parent=0 // pred_check
    %p85 = pneg %p67
  $region35: #{tpu_custom_call.1} parent=0 // pred_check_branch
    %87 = sbr.rel (%p85) target = $region37
  $region36: #{tpu_custom_call.1} parent=0 // pred_region
    %v88 = vld [vmem:[%s2] sm:$0xff]
    %v89 = vld [vmem:[#allocation2] sm:$0xff]
    %vm90 = vcmask 64512
    %v91 = vsel %vm90, %v89, -inf
    %92 = vmax.xlane.f32.xlu0 %v91
    %v93 = vpop.xlane.xlu0 %92
    %v94 = vadd.f32 %v93, %v88
    %v95 = vld [vmem:[#allocation3] sm:$0xff]
    %v96 = vsel %vm90, %v95, inf
    %97 = vmin.xlane.f32.xlu0 %v96
    %v98 = vpop.xlane.xlu0 %97
    %v99 = vadd.f32 %v98, %v88
    %v100 = vmax.f32 %v94, 1e-12
    %v101 = vrsqrt.pop %v100
    %v102 = vmul.f32 %v101, %v100
    %v103 = vmul.f32 %v102, %v101
    %v104 = vmul.f32 0.5, %v103
    %v105 = vsub.f32 1.5, %v104
    %v106 = vmul.f32 %v101, %v105
    %v107 = vmul.f32 %v100, %v106
    %vm108 = vcmp.eq.f32.partialorder %v100, inf
    %v109 = vsel %vm108, %v100, %v107
    %vm110 = vcmp.eq.f32.partialorder %v100, 0.0
    %v111 = vand.u32 %v100, 2147483648
    %v112 = vsel %vm110, %v111, %v109
    %v113 = vmax.f32 %v99, 1e-12
    %v114 = vrsqrt.pop %v113
    %v115 = vmul.f32 %v114, %v113
    %v116 = vmul.f32 %v115, %v114
    %v117 = vmul.f32 0.5, %v116
    %v118 = vsub.f32 1.5, %v117
    %v119 = vmul.f32 %v114, %v118
    %v120 = vmul.f32 %v113, %v119
    %vm121 = vcmp.eq.f32.partialorder %v113, inf
    %v122 = vsel %vm121, %v113, %v120
    %vm123 = vcmp.eq.f32.partialorder %v113, 0.0
    %v124 = vand.u32 %v113, 2147483648
    %v125 = vsel %vm123, %v124, %v122
    %v126 = vsub.f32 %v112, %v125
    %v127 = vadd.f32 %v126, 0.3
    %v128 = vmax.f32 %v127, 0.0
    %vm129 = vcmask 7168
    %130 = vst.msk [vmem:[%s6] sm:$0xff] %vm129, %v128
  $region37: #{tpu_custom_call.1} parent=0 // pred_fallthru
    _
  // Predicated region
  $region38: #{tpu_custom_call.1} parent=0 // pred_check
    _
  $region39: #{tpu_custom_call.1} parent=0 // pred_check_branch
    %132 = sbr.rel (0) target = $region41
  $region40: #{tpu_custom_call.1} parent=0 // pred_region
    _
  $region41: #{tpu_custom_call.1} parent=0 // pred_fallthru
    _
  // Predicated region
  $region42: #{tpu_custom_call.1} parent=0 // pred_check
    _
  $region43: #{tpu_custom_call.1} parent=0 // pred_check_branch
    %134 = sbr.rel (0) target = $region45
  $region44: #{tpu_custom_call.1} parent=0 // pred_region
    _
  $region45: #{tpu_custom_call.1} parent=0 // pred_fallthru
    _

</llo_original>
